<compile_context>
chip_gen: v7x
topology: tpu7x:2x2x1
jax: 0.10.0
libtpu: 0.0.40
codegen_flags: <defaults>
</compile_context>

<pallas_src>
import functools

import jax
import jax.numpy as jnp
import numpy as np
from jax.experimental import pallas as pl
from jax.experimental.pallas import tpu as pltpu

LANE = 128      # TPU lane width
SUBLANE = 8     # TPU sublane width
_VMEM_BUDGET = 40 * 2**20   # per-kernel working-set budget (v7x has 64 MiB physical)


def _round_up(x, m):
    return ((x + m - 1) // m) * m


def _cdiv(a, b):
    return (a + b - 1) // b


def decoder_kernel(z_ref, w1_ref, b1_ref, w2_ref, b2_ref, out_ref):
    # fc_hidden: bf16 MXU matmul with f32 accumulation, then LeakyReLU(0.2).
    z = z_ref[...].astype(jnp.bfloat16)
    h = jnp.dot(z, w1_ref[...], preferred_element_type=jnp.float32)
    h = h + b1_ref[...]                        # (1, hidden_p) broadcasts over batch tile
    h = jnp.maximum(h, 0.2 * h)                # LeakyReLU(negative_slope=0.2), one VPU op

    # fc_output: bf16 MXU matmul with f32 accumulation.
    o = jnp.dot(h.astype(jnp.bfloat16), w2_ref[...], preferred_element_type=jnp.float32)
    o = o + b2_ref[...]                        # (1, output_dim)

    # sigmoid(o) == 0.5 * (tanh(o/2) + 1): tanh runs on the EUP, no VPU divide.
    out_ref[...] = (0.5 * (jnp.tanh(0.5 * o) + 1.0)).astype(out_ref.dtype)


def _vmem_bytes(tb, latent, hidden_p, out_w, weight_bufs):
    """Rough per-kernel VMEM working-set estimate (bytes)."""
    z_tiles = 2 * tb * latent * 4                                   # f32 input, double-buffered
    out_tiles = 2 * tb * out_w * 4                                  # f32 output, double-buffered
    h_tmp = tb * hidden_p * 4                                       # f32 intermediate
    weights = weight_bufs * 2 * (latent * hidden_p + hidden_p * out_w)   # bf16 weights
    biases = weight_bufs * 4 * (hidden_p + out_w)                   # f32 biases
    return z_tiles + out_tiles + h_tmp + weights + biases


def _resident_spec(shape, buffers):
    """BlockSpec for a grid-invariant (resident) operand."""
    if buffers is None:
        return pl.BlockSpec(shape, lambda i: (0, 0))
    return pl.BlockSpec(shape, lambda i: (0, 0), pipeline_mode=pl.Buffered(buffers))


@functools.partial(jax.jit, static_argnames=("block_batch", "weight_buffers", "out_dtype"))
def _decoder_forward_impl(z, w1, b1, w2, b2, *, block_batch, weight_buffers, out_dtype):
    batch, latent_dim = z.shape
    hidden_dim = w1.shape[1]
    output_dim = w2.shape[1]

    # Lane-dense hidden width (only touches resident weights and the in-VMEM
    # intermediate; zero-padded columns/rows contribute exactly nothing).
    hidden_p = _round_up(hidden_dim, LANE)
    # Output keeps its true width: no extra writeback bytes, no post-kernel slice.
    out_w = output_dim

    # --- batch tile selection: VMEM-feasible, then balanced across tiles ---
    wbuf = 2 if weight_buffers is None else weight_buffers
    tb_cap = max(block_batch, SUBLANE)
    while tb_cap > SUBLANE and _vmem_bytes(tb_cap, latent_dim, hidden_p, out_w, wbuf) > _VMEM_BUDGET:
        tb_cap //= 2

    if batch <= tb_cap:
        tb = batch                      # single full-extent tile: no batch padding at all
    else:
        n_tiles = _cdiv(batch, tb_cap)
        tb = min(_round_up(_cdiv(batch, n_tiles), SUBLANE), _round_up(tb_cap, SUBLANE))
    batch_p = _cdiv(batch, tb) * tb

    # Pads are identity ops when dims already line up (no extra HBM passes).
    z_p = z if batch_p == batch else jnp.pad(z, ((0, batch_p - batch), (0, 0)))
    w1_p = jnp.pad(w1, ((0, 0), (0, hidden_p - hidden_dim))).astype(jnp.bfloat16)
    b1_p = jnp.pad(b1, ((0, 0), (0, hidden_p - hidden_dim)))
    w2_p = jnp.pad(w2, ((0, hidden_p - hidden_dim), (0, 0))).astype(jnp.bfloat16)
    b2_p = b2

    vmem_need = _vmem_bytes(tb, latent_dim, hidden_p, out_w, wbuf)
    vmem_limit = int(min(48 * 2**20, max(32 * 2**20, 2 * vmem_need)))

    grid = (batch_p // tb,)

    out_p = pl.pallas_call(
        decoder_kernel,
        out_shape=jax.ShapeDtypeStruct((batch_p, out_w), out_dtype),
        grid=grid,
        in_specs=[
            pl.BlockSpec((tb, latent_dim), lambda i: (i, 0)),       # z: tiled over batch
            _resident_spec((latent_dim, hidden_p), weight_buffers),  # w1 (bf16, resident)
            _resident_spec((1, hidden_p), weight_buffers),           # b1 (f32, resident)
            _resident_spec((hidden_p, out_w), weight_buffers),       # w2 (bf16, resident)
            _resident_spec((1, out_w), weight_buffers),              # b2 (f32, resident)
        ],
        out_specs=pl.BlockSpec((tb, out_w), lambda i: (i, 0)),
        compiler_params=pltpu.CompilerParams(
            dimension_semantics=("parallel",),   # shard batch tiles across TCs on v7x
            vmem_limit_bytes=vmem_limit,
        ),
    )(z_p, w1_p, b1_p, w2_p, b2_p)

    return out_p if batch_p == batch else out_p[:batch]


def decoder_forward(z, w1, b1, w2, b2, *, block_batch=1024, out_dtype=jnp.float32):
    """Equivalent of Decoder.forward(z). Weights stored (in, out); biases (1, out)."""
    try:
        # Preferred: single-buffer the grid-invariant weights (halves their VMEM).
        return _decoder_forward_impl(z, w1, b1, w2, b2, block_batch=block_batch,
                                     weight_buffers=1, out_dtype=out_dtype)
    except Exception:
        # Fallback if pipeline_mode=pl.Buffered(1) is not supported by this build.
        return _decoder_forward_impl(z, w1, b1, w2, b2, block_batch=block_batch,
                                     weight_buffers=None, out_dtype=out_dtype)


def init_params(key, latent_dim, hidden_dim, output_dim):
    # Deterministic init mimicking nn.Linear's uniform(-1/sqrt(fan_in), 1/sqrt(fan_in)).
    k1, k2, k3, k4 = jax.random.split(key, 4)
    bound1 = 1.0 / np.sqrt(latent_dim)
    bound2 = 1.0 / np.sqrt(hidden_dim)
    w1 = jax.random.uniform(k1, (latent_dim, hidden_dim), jnp.float32, -bound1, bound1)
    b1 = jax.random.uniform(k2, (1, hidden_dim), jnp.float32, -bound1, bound1)
    w2 = jax.random.uniform(k3, (hidden_dim, output_dim), jnp.float32, -bound2, bound2)
    b2 = jax.random.uniform(k4, (1, output_dim), jnp.float32, -bound2, bound2)
    return w1, b1, w2, b2


def _reference(z, w1, b1, w2, b2):
    h = z @ w1 + b1
    h = jnp.where(h > 0, h, 0.2 * h)
    return jax.nn.sigmoid(h @ w2 + b2)


if __name__ == "__main__":
    latent_dim, hidden_dim, output_dim = 16, 32, 64
    key = jax.random.PRNGKey(0)
    kz, kz2, kp = jax.random.split(key, 3)
    w1, b1, w2, b2 = init_params(kp, latent_dim, hidden_dim, output_dim)

    # Case 1: small batch, single full-extent tile (no padding anywhere).
    batch = 8
    z = jax.random.normal(kz, (batch, latent_dim), jnp.float32)
    x_hat = jax.block_until_ready(decoder_forward(z, w1, b1, w2, b2))
    ref = _reference(z, w1, b1, w2, b2)
    # bf16 MXU path differs from the f32 reference at ~1e-3 relative (f32 accumulation).
    np.testing.assert_allclose(np.asarray(x_hat), np.asarray(ref), rtol=2e-2, atol=2e-2)
    assert x_hat.shape == (batch, output_dim)

    # Case 2: ragged multi-tile batch exercises the balanced tiling + row padding path.
    batch2 = 300
    z2 = jax.random.normal(kz2, (batch2, latent_dim), jnp.float32)
    x_hat2 = jax.block_until_ready(decoder_forward(z2, w1, b1, w2, b2, block_batch=128))
    ref2 = _reference(z2, w1, b1, w2, b2)
    np.testing.assert_allclose(np.asarray(x_hat2), np.asarray(ref2), rtol=2e-2, atol=2e-2)
    assert x_hat2.shape == (batch2, output_dim)

    print("KERNEL_OK")
</pallas_src>

<mosaic_0001>
module attributes {stable_mosaic.version = 11 : i64} {
  func.func @decoder_kernel(%arg0: i32, %arg1: memref<8x16xf32, #tpu.memory_space<vmem>>, %arg2: memref<16x128xbf16, #tpu.memory_space<vmem>>, %arg3: memref<1x128xf32, #tpu.memory_space<vmem>>, %arg4: memref<128x64xbf16, #tpu.memory_space<vmem>>, %arg5: memref<1x64xf32, #tpu.memory_space<vmem>>, %arg6: memref<8x64xf32, #tpu.memory_space<vmem>>) attributes {dimension_semantics = [#tpu.dimension_semantics<parallel>], iteration_bounds = array<i64: 1>, scalar_prefetch = 0 : i64, scratch_operands = 0 : i64, tpu.core_type = #tpu.core_type<tc>, window_params = [{transform_indices = @transform_0, window_bounds = array<i64: 8, 16>}, {pipeline_mode = #tpu.pipeline_mode<synchronous>, transform_indices = @transform_1, window_bounds = array<i64: 16, 128>}, {pipeline_mode = #tpu.pipeline_mode<synchronous>, transform_indices = @transform_2, window_bounds = array<i64: 1, 128>}, {pipeline_mode = #tpu.pipeline_mode<synchronous>, transform_indices = @transform_3, window_bounds = array<i64: 128, 64>}, {pipeline_mode = #tpu.pipeline_mode<synchronous>, transform_indices = @transform_4, window_bounds = array<i64: 1, 64>}, {transform_indices = @transform_5, window_bounds = array<i64: 8, 64>}]} {
    %c0 = arith.constant 0 : index
    %c0_0 = arith.constant 0 : index
    %0 = vector.load %arg1[%c0, %c0_0] : memref<8x16xf32, #tpu.memory_space<vmem>>, vector<8x16xf32>
    %1 = arith.truncf %0 : vector<8x16xf32> to vector<8x16xbf16>
    %c0_1 = arith.constant 0 : index
    %c0_2 = arith.constant 0 : index
    %2 = vector.load %arg2[%c0_1, %c0_2] : memref<16x128xbf16, #tpu.memory_space<vmem>>, vector<16x128xbf16>
    %cst = arith.constant dense<0.000000e+00> : vector<8x128xf32>
    %3 = tpu.matmul %1, %2, %cst {dimension_numbers = #tpu.dot_dimension_numbers<[1], [0], [0], [1], [0, 0, 1, 1], [], []>} : vector<8x16xbf16>, vector<16x128xbf16>, vector<8x128xf32> -> vector<8x128xf32>
    %c0_3 = arith.constant 0 : index
    %c0_4 = arith.constant 0 : index
    %4 = vector.load %arg3[%c0_3, %c0_4] : memref<1x128xf32, #tpu.memory_space<vmem>>, vector<1x128xf32>
    %5 = vector.broadcast %4 : vector<1x128xf32> to vector<8x128xf32>
    %6 = arith.addf %3, %5 : vector<8x128xf32>
    %cst_5 = arith.constant 2.000000e-01 : f32
    %7 = vector.broadcast %cst_5 : f32 to vector<8x128xf32>
    %8 = arith.mulf %7, %6 : vector<8x128xf32>
    %9 = arith.maximumf %6, %8 : vector<8x128xf32>
    %10 = arith.truncf %9 : vector<8x128xf32> to vector<8x128xbf16>
    %c0_6 = arith.constant 0 : index
    %c0_7 = arith.constant 0 : index
    %11 = vector.load %arg4[%c0_6, %c0_7] : memref<128x64xbf16, #tpu.memory_space<vmem>>, vector<128x64xbf16>
    %cst_8 = arith.constant dense<0.000000e+00> : vector<8x64xf32>
    %12 = tpu.matmul %10, %11, %cst_8 {dimension_numbers = #tpu.dot_dimension_numbers<[1], [0], [0], [1], [0, 0, 1, 1], [], []>} : vector<8x128xbf16>, vector<128x64xbf16>, vector<8x64xf32> -> vector<8x64xf32>
    %c0_9 = arith.constant 0 : index
    %c0_10 = arith.constant 0 : index
    %13 = vector.load %arg5[%c0_9, %c0_10] : memref<1x64xf32, #tpu.memory_space<vmem>>, vector<1x64xf32>
    %14 = vector.broadcast %13 : vector<1x64xf32> to vector<8x64xf32>
    %15 = arith.addf %12, %14 : vector<8x64xf32>
    %cst_11 = arith.constant 5.000000e-01 : f32
    %16 = vector.broadcast %cst_11 : f32 to vector<8x64xf32>
    %17 = arith.mulf %16, %15 : vector<8x64xf32>
    %18 = math.tanh %17 : vector<8x64xf32>
    %cst_12 = arith.constant 1.000000e+00 : f32
    %19 = vector.broadcast %cst_12 : f32 to vector<8x64xf32>
    %20 = arith.addf %18, %19 : vector<8x64xf32>
    %cst_13 = arith.constant 5.000000e-01 : f32
    %21 = vector.broadcast %cst_13 : f32 to vector<8x64xf32>
    %22 = arith.mulf %21, %20 : vector<8x64xf32>
    %c0_14 = arith.constant 0 : index
    %c0_15 = arith.constant 0 : index
    %23 = vector.load %arg6[%c0_14, %c0_15] : memref<8x64xf32, #tpu.memory_space<vmem>>, vector<8x64xf32>
    tpu.vector_store %arg6[%c0_14, %c0_15], %22 {strides = array<i32>} : memref<8x64xf32, #tpu.memory_space<vmem>>, vector<8x64xf32>,
    return
  }
  func.func @transform_0(%arg0: i32) -> (i32, i32) {
    %c0_i32 = arith.constant 0 : i32
    %c0_i32_0 = arith.constant 0 : i32
    return %arg0, %c0_i32 : i32, i32
  }
  func.func @transform_1(%arg0: i32) -> (i32, i32) {
    %c0_i32 = arith.constant 0 : i32
    %c0_i32_0 = arith.constant 0 : i32
    %c0_i32_1 = arith.constant 0 : i32
    return %c0_i32, %c0_i32_0 : i32, i32
  }
  func.func @transform_2(%arg0: i32) -> (i32, i32) {
    %c0_i32 = arith.constant 0 : i32
    %c0_i32_0 = arith.constant 0 : i32
    %c0_i32_1 = arith.constant 0 : i32
    return %c0_i32, %c0_i32_0 : i32, i32
  }
  func.func @transform_3(%arg0: i32) -> (i32, i32) {
    %c0_i32 = arith.constant 0 : i32
    %c0_i32_0 = arith.constant 0 : i32
    %c0_i32_1 = arith.constant 0 : i32
    return %c0_i32, %c0_i32_0 : i32, i32
  }
  func.func @transform_4(%arg0: i32) -> (i32, i32) {
    %c0_i32 = arith.constant 0 : i32
    %c0_i32_0 = arith.constant 0 : i32
    %c0_i32_1 = arith.constant 0 : i32
    return %c0_i32, %c0_i32_0 : i32, i32
  }
  func.func @transform_5(%arg0: i32) -> (i32, i32) {
    %c0_i32 = arith.constant 0 : i32
    %c0_i32_0 = arith.constant 0 : i32
    return %arg0, %c0_i32 : i32, i32
  }
}

module attributes {stable_mosaic.version = 11 : i64} {
  func.func @decoder_kernel(%arg0: i32, %arg1: memref<8x16xf32, #tpu.memory_space<vmem>>, %arg2: memref<16x128xbf16, #tpu.memory_space<vmem>>, %arg3: memref<1x128xf32, #tpu.memory_space<vmem>>, %arg4: memref<128x64xbf16, #tpu.memory_space<vmem>>, %arg5: memref<1x64xf32, #tpu.memory_space<vmem>>, %arg6: memref<8x64xf32, #tpu.memory_space<vmem>>) attributes {dimension_semantics = [#tpu.dimension_semantics<parallel>], iteration_bounds = array<i64: 1>, scalar_prefetch = 0 : i64, scratch_operands = 0 : i64, tpu.core_type = #tpu.core_type<tc>, window_params = [{transform_indices = @transform_0, window_bounds = array<i64: 8, 16>}, {pipeline_mode = #tpu.pipeline_mode<synchronous>, transform_indices = @transform_1, window_bounds = array<i64: 16, 128>}, {pipeline_mode = #tpu.pipeline_mode<synchronous>, transform_indices = @transform_2, window_bounds = array<i64: 1, 128>}, {pipeline_mode = #tpu.pipeline_mode<synchronous>, transform_indices = @transform_3, window_bounds = array<i64: 128, 64>}, {pipeline_mode = #tpu.pipeline_mode<synchronous>, transform_indices = @transform_4, window_bounds = array<i64: 1, 64>}, {transform_indices = @transform_5, window_bounds = array<i64: 8, 64>}]} {
    %c0 = arith.constant 0 : index
    %c0_0 = arith.constant 0 : index
    %0 = vector.load %arg1[%c0, %c0_0] : memref<8x16xf32, #tpu.memory_space<vmem>>, vector<8x16xf32>
    %1 = arith.truncf %0 : vector<8x16xf32> to vector<8x16xbf16>
    %c0_1 = arith.constant 0 : index
    %c0_2 = arith.constant 0 : index
    %2 = vector.load %arg2[%c0_1, %c0_2] : memref<16x128xbf16, #tpu.memory_space<vmem>>, vector<16x128xbf16>
    %cst = arith.constant dense<0.000000e+00> : vector<8x128xf32>
    %3 = tpu.matmul %1, %2, %cst {dimension_numbers = #tpu.dot_dimension_numbers<[1], [0], [0], [1], [0, 0, 1, 1], [], []>} : vector<8x16xbf16>, vector<16x128xbf16>, vector<8x128xf32> -> vector<8x128xf32>
    %c0_3 = arith.constant 0 : index
    %c0_4 = arith.constant 0 : index
    %4 = vector.load %arg3[%c0_3, %c0_4] : memref<1x128xf32, #tpu.memory_space<vmem>>, vector<1x128xf32>
    %5 = vector.broadcast %4 : vector<1x128xf32> to vector<8x128xf32>
    %6 = arith.addf %3, %5 : vector<8x128xf32>
    %cst_5 = arith.constant 2.000000e-01 : f32
    %7 = vector.broadcast %cst_5 : f32 to vector<8x128xf32>
    %8 = arith.mulf %7, %6 : vector<8x128xf32>
    %9 = arith.maximumf %6, %8 : vector<8x128xf32>
    %10 = arith.truncf %9 : vector<8x128xf32> to vector<8x128xbf16>
    %c0_6 = arith.constant 0 : index
    %c0_7 = arith.constant 0 : index
    %11 = vector.load %arg4[%c0_6, %c0_7] : memref<128x64xbf16, #tpu.memory_space<vmem>>, vector<128x64xbf16>
    %cst_8 = arith.constant dense<0.000000e+00> : vector<8x64xf32>
    %12 = tpu.matmul %10, %11, %cst_8 {dimension_numbers = #tpu.dot_dimension_numbers<[1], [0], [0], [1], [0, 0, 1, 1], [], []>} : vector<8x128xbf16>, vector<128x64xbf16>, vector<8x64xf32> -> vector<8x64xf32>
    %c0_9 = arith.constant 0 : index
    %c0_10 = arith.constant 0 : index
    %13 = vector.load %arg5[%c0_9, %c0_10] : memref<1x64xf32, #tpu.memory_space<vmem>>, vector<1x64xf32>
    %14 = vector.broadcast %13 : vector<1x64xf32> to vector<8x64xf32>
    %15 = arith.addf %12, %14 : vector<8x64xf32>
    %cst_11 = arith.constant 5.000000e-01 : f32
    %16 = vector.broadcast %cst_11 : f32 to vector<8x64xf32>
    %17 = arith.mulf %16, %15 : vector<8x64xf32>
    %18 = math.tanh %17 : vector<8x64xf32>
    %cst_12 = arith.constant 1.000000e+00 : f32
    %19 = vector.broadcast %cst_12 : f32 to vector<8x64xf32>
    %20 = arith.addf %18, %19 : vector<8x64xf32>
    %cst_13 = arith.constant 5.000000e-01 : f32
    %21 = vector.broadcast %cst_13 : f32 to vector<8x64xf32>
    %22 = arith.mulf %21, %20 : vector<8x64xf32>
    %c0_14 = arith.constant 0 : index
    %c0_15 = arith.constant 0 : index
    %23 = vector.load %arg6[%c0_14, %c0_15] : memref<8x64xf32, #tpu.memory_space<vmem>>, vector<8x64xf32>
    tpu.vector_store %arg6[%c0_14, %c0_15], %22 {strides = array<i32>} : memref<8x64xf32, #tpu.memory_space<vmem>>, vector<8x64xf32>,
    return
  }
  func.func @transform_0(%arg0: i32) -> (i32, i32) {
    %c0_i32 = arith.constant 0 : i32
    %c0_i32_0 = arith.constant 0 : i32
    return %arg0, %c0_i32 : i32, i32
  }
  func.func @transform_1(%arg0: i32) -> (i32, i32) {
    %c0_i32 = arith.constant 0 : i32
    %c0_i32_0 = arith.constant 0 : i32
    %c0_i32_1 = arith.constant 0 : i32
    return %c0_i32, %c0_i32_0 : i32, i32
  }
  func.func @transform_2(%arg0: i32) -> (i32, i32) {
    %c0_i32 = arith.constant 0 : i32
    %c0_i32_0 = arith.constant 0 : i32
    %c0_i32_1 = arith.constant 0 : i32
    return %c0_i32, %c0_i32_0 : i32, i32
  }
  func.func @transform_3(%arg0: i32) -> (i32, i32) {
    %c0_i32 = arith.constant 0 : i32
    %c0_i32_0 = arith.constant 0 : i32
    %c0_i32_1 = arith.constant 0 : i32
    return %c0_i32, %c0_i32_0 : i32, i32
  }
  func.func @transform_4(%arg0: i32) -> (i32, i32) {
    %c0_i32 = arith.constant 0 : i32
    %c0_i32_0 = arith.constant 0 : i32
    %c0_i32_1 = arith.constant 0 : i32
    return %c0_i32, %c0_i32_0 : i32, i32
  }
  func.func @transform_5(%arg0: i32) -> (i32, i32) {
    %c0_i32 = arith.constant 0 : i32
    %c0_i32_0 = arith.constant 0 : i32
    return %arg0, %c0_i32 : i32, i32
  }
}

</mosaic_0001>

<llo_original>
// kernel: _decoder_forward_impl.1
$region0: #{_decoder_forward_impl.1}
  #allocation0 [shape = 'u32[]', space=smem, size = 0x4, offset = 0x4, fixed_abs, tag = 'smem constant byte address 0x4 - core index']
  #allocation1 [shape = 'u32[144,128]{1,0:T(1,128)}', space=vmem, size = 0x12000, scoped, tag = 'internal scratch']
  %s0 = inlined_call_operand.vmem [shape: f32[8,16], index: 0, kind: input, shape index: {}]
  %s1 = inlined_call_operand.vmem [shape: bf16[16,128], index: 1, kind: input, shape index: {}]
  %s2 = inlined_call_operand.vmem [shape: f32[1,128], index: 2, kind: input, shape index: {}]
  %s3 = inlined_call_operand.vmem [shape: bf16[128,64], index: 3, kind: input, shape index: {}]
  %s4 = inlined_call_operand.vmem [shape: f32[1,64], index: 4, kind: input, shape index: {}]
  %s5 = inlined_call_operand.hbm [shape: f32[8,64], index: 5, kind: output, shape index: {}]
  %s6 = sld [smem:[#allocation0]]
  $region30: #{_decoder_forward_impl.1} parent=0
    _
  %s8 = ssub.s32 1, %s6
  %s9 = scalar_select 0, %s8, %s6
  $region1: #{_decoder_forward_impl.1} parent=0
    #allocation2 [shape = 'u8[4096]{0}', space=vmem, size = 0x1000, scoped, tag = 'output window, operand 0, single buffered']
    #allocation3 [shape = 's32[1]{0}', space=sflag, size = 0x4, scoped, tag = 'scoped memory for _decoder_forward_impl.1']
    %10 = vsyncpa [#allocation3], 0
    // Predicated region
    $region2: #{_decoder_forward_impl.1} parent=1 // pred_check
      _
    $region3: #{_decoder_forward_impl.1} parent=1 // pred_check_branch
      %12 = sbr.rel (0) target = $region5
    $region4: #{_decoder_forward_impl.1} parent=1 // pred_region
      _
    $region5: #{_decoder_forward_impl.1} parent=1 // pred_fallthru
      _
    // Predicated region
    $region6: #{_decoder_forward_impl.1} parent=1 // pred_check
      _
    $region7: #{_decoder_forward_impl.1} parent=1 // pred_check_branch
      %14 = sbr.rel (0) target = $region9
    $region8: #{_decoder_forward_impl.1} parent=1 // pred_region
      _
    $region9: #{_decoder_forward_impl.1} parent=1 // pred_fallthru
      _
    // Predicated region
    $region10: #{_decoder_forward_impl.1} parent=1 // pred_check
      _
    $region11: #{_decoder_forward_impl.1} parent=1 // pred_check_branch
      %16 = sbr.rel (0) target = $region13
    $region12: #{_decoder_forward_impl.1} parent=1 // pred_region
      _
    $region13: #{_decoder_forward_impl.1} parent=1 // pred_fallthru
      _
    // Predicated region
    $region14: #{_decoder_forward_impl.1} parent=1 // pred_check
      _
    $region15: #{_decoder_forward_impl.1} parent=1 // pred_check_branch
      %18 = sbr.rel (0) target = $region17
    $region16: #{_decoder_forward_impl.1} parent=1 // pred_region
      _
    $region17: #{_decoder_forward_impl.1} parent=1 // pred_fallthru
      _
    // Predicated region
    $region18: #{_decoder_forward_impl.1} parent=1 // pred_check
      _
    $region19: #{_decoder_forward_impl.1} parent=1 // pred_check_branch
      %20 = sbr.rel (0) target = $region21
    $region20: #{_decoder_forward_impl.1} parent=1 // pred_region
      _
    $region21: #{_decoder_forward_impl.1} parent=1 // pred_fallthru
      _
    %v22 = vld [vmem:[%s0] sm:$0xff]
    %v23 = vpack.c.bf16 %v22, %v22
    %v24 = vld [vmem:[%s1] sm:$0xf]
    %v25 = vld [vmem:[%s1 + $0x4] sm:$0xf]
    %v26 = vld [vmem:[%s2] sm:$0x1]
    %v28 = vlaneseq
    %v29 = vshrl.u32 %v28, 7
    %v30 = vsub.s32 0, %v29
    %v31 = vrot.slane %v26, %v30
    %v35 = vunpack.c.l.b16 %v24
    %v36 = vunpack.c.l.b16 %v25
    %v37 = vpack.c.b16 %v36, %v35
    %vm39 = vcmask 130048
    %v41 = vsel %vm39, %v23, 0
    %43 = vmatprep.subr.bf16.mxu0 0
    %44 = vmatpush1.bf16.msra.mxu0 %v37
    %45 = vmatprep.subr.bf16.mxu0 0
    %46 = vmatpush1.bf16.msra.mxu0 0
    %47 = vmatprep.subr.bf16.mxu0 0
    %48 = vmatpush1.bf16.msra.mxu0 0
    %49 = vmatprep.subr.bf16.mxu0 0
    %50 = vmatpush1.bf16.msra.mxu0 0
    %51 = vmatprep.subr.bf16.mxu0 0
    %52 = vmatpush1.bf16.msra.mxu0 0
    %53 = vmatprep.subr.bf16.mxu0 0
    %54 = vmatpush1.bf16.msra.mxu0 0
    %55 = vmatprep.subr.bf16.mxu0 0
    %56 = vmatpush1.bf16.msra.mxu0 0
    %57 = vmatprep.subr.bf16.mxu0 0
    %58 = vmatpush1.bf16.msra.mxu0 0
    %59 = vmatprep.subr.bf16.mxu0 0
    %60 = vmatpush1.bf16.msra.mxu0 0
    %61 = vmatprep.subr.bf16.mxu0 0
    %62 = vmatpush1.bf16.msra.mxu0 0
    %63 = vmatprep.subr.bf16.mxu0 0
    %64 = vmatpush1.bf16.msra.mxu0 0
    %65 = vmatprep.subr.bf16.mxu0 0
    %66 = vmatpush1.bf16.msra.mxu0 0
    %67 = vmatprep.subr.bf16.mxu0 0
    %68 = vmatpush1.bf16.msra.mxu0 0
    %69 = vmatprep.subr.bf16.mxu0 0
    %70 = vmatpush1.bf16.msra.mxu0 0
    %71 = vmatprep.subr.bf16.mxu0 0
    %72 = vmatpush1.bf16.msra.mxu0 0
    %73 = vmatprep.subr.bf16.mxu0 0
    %74 = vmatpush1.bf16.msra.mxu0 0
    %75 = vmatprep.mubr.bf16.mxu0 0
    %76 = vmatmul.mubr.bf16.gmra.mrb[0].mxu0 %v41
    %v77 = vpop.f32.mrb[0].mxu0
    %v78 = vadd.f32 %v31, %v77
    %v79 = vpop.f32.mrb[0].mxu0
    %v80 = vpop.f32.mrb[0].mxu0
    %v81 = vpop.f32.mrb[0].mxu0
    %82 = vdwg.mxu0
    %v83 = vmul.f32 %v78, 0.2
    %v84 = vmax.f32 %v78, %v83
    %v85 = vpack.c.bf16 %v84, %v84
    %v86 = vld [vmem:[%s3] sm:$0xf]
    %v87 = vld [vmem:[%s3 + $0x4] sm:$0xf]
    %v88 = vld [vmem:[%s3 + $0x8] sm:$0xf]
    %v89 = vld [vmem:[%s3 + $0xc] sm:$0xf]
    %v90 = vld [vmem:[%s3 + $0x10] sm:$0xf]
    %v91 = vld [vmem:[%s3 + $0x14] sm:$0xf]
    %v92 = vld [vmem:[%s3 + $0x18] sm:$0xf]
    %v93 = vld [vmem:[%s3 + $0x1c] sm:$0xf]
    %v94 = vld [vmem:[%s3 + $0x20] sm:$0xf]
    %v95 = vld [vmem:[%s3 + $0x24] sm:$0xf]
    %v96 = vld [vmem:[%s3 + $0x28] sm:$0xf]
    %v97 = vld [vmem:[%s3 + $0x2c] sm:$0xf]
    %v98 = vld [vmem:[%s3 + $0x30] sm:$0xf]
    %v99 = vld [vmem:[%s3 + $0x34] sm:$0xf]
    %v100 = vld [vmem:[%s3 + $0x38] sm:$0xf]
    %v101 = vld [vmem:[%s3 + $0x3c] sm:$0xf]
    %v102 = vld [vmem:[%s4] sm:$0x1]
    %v104 = vlaneseq
    %v105 = vshrl.u32 %v104, 7
    %v106 = vsub.s32 0, %v105
    %v107 = vrot.slane %v102, %v106
    %v125 = vunpack.c.l.b16 %v86
    %v126 = vunpack.c.l.b16 %v87
    %v127 = vunpack.c.l.b16 %v88
    %v128 = vunpack.c.l.b16 %v89
    %v129 = vunpack.c.l.b16 %v90
    %v130 = vunpack.c.l.b16 %v91
    %v131 = vunpack.c.l.b16 %v92
    %v132 = vunpack.c.l.b16 %v93
    %v133 = vunpack.c.l.b16 %v94
    %v134 = vunpack.c.l.b16 %v95
    %v135 = vunpack.c.l.b16 %v96
    %v136 = vunpack.c.l.b16 %v97
    %v137 = vunpack.c.l.b16 %v98
    %v138 = vunpack.c.l.b16 %v99
    %v139 = vunpack.c.l.b16 %v100
    %v140 = vunpack.c.l.b16 %v101
    %v141 = vpack.c.b16 %v126, %v125
    %v142 = vpack.c.b16 %v128, %v127
    %v143 = vpack.c.b16 %v130, %v129
    %v144 = vpack.c.b16 %v132, %v131
    %v145 = vpack.c.b16 %v134, %v133
    %v146 = vpack.c.b16 %v136, %v135
    %v147 = vpack.c.b16 %v138, %v137
    %v148 = vpack.c.b16 %v140, %v139
    %157 = vmatprep.subr.bf16.mxu0 0
    %158 = vmatpush1.bf16.msra.mxu0 %v141
    %159 = vmatprep.subr.bf16.mxu0 0
    %160 = vmatpush1.bf16.msra.mxu0 %v142
    %161 = vmatprep.subr.bf16.mxu0 0
    %162 = vmatpush1.bf16.msra.mxu0 %v143
    %163 = vmatprep.subr.bf16.mxu0 0
    %164 = vmatpush1.bf16.msra.mxu0 %v144
    %165 = vmatprep.subr.bf16.mxu0 0
    %166 = vmatpush1.bf16.msra.mxu0 %v145
    %167 = vmatprep.subr.bf16.mxu0 0
    %168 = vmatpush1.bf16.msra.mxu0 %v146
    %169 = vmatprep.subr.bf16.mxu0 0
    %170 = vmatpush1.bf16.msra.mxu0 %v147
    %171 = vmatprep.subr.bf16.mxu0 0
    %172 = vmatpush1.bf16.msra.mxu0 %v148
    %173 = vmatprep.subr.bf16.mxu0 0
    %174 = vmatpush1.bf16.msra.mxu0 0
    %175 = vmatprep.subr.bf16.mxu0 0
    %176 = vmatpush1.bf16.msra.mxu0 0
    %177 = vmatprep.subr.bf16.mxu0 0
    %178 = vmatpush1.bf16.msra.mxu0 0
    %179 = vmatprep.subr.bf16.mxu0 0
    %180 = vmatpush1.bf16.msra.mxu0 0
    %181 = vmatprep.subr.bf16.mxu0 0
    %182 = vmatpush1.bf16.msra.mxu0 0
    %183 = vmatprep.subr.bf16.mxu0 0
    %184 = vmatpush1.bf16.msra.mxu0 0
    %185 = vmatprep.subr.bf16.mxu0 0
    %186 = vmatpush1.bf16.msra.mxu0 0
    %187 = vmatprep.subr.bf16.mxu0 0
    %188 = vmatpush1.bf16.msra.mxu0 0
    %189 = vmatprep.mubr.bf16.mxu0 0
    %190 = vmatmul.mubr.bf16.gmra.mrb[0].mxu0 %v85
    %v191 = vpop.f32.mrb[0].mxu0
    %v192 = vadd.f32 %v107, %v191
    %v193 = vpop.f32.mrb[0].mxu0
    %v194 = vpop.f32.mrb[0].mxu0
    %v195 = vpop.f32.mrb[0].mxu0
    %196 = vdwg.mxu0
    %v197 = vmul.f32 %v192, 0.5
    %v198 = vtanh.pop %v197
    %v199 = vadd.f32 %v198, 1.0
    %v200 = vmul.f32 %v199, 0.5
    %vm201 = vcmask 523264
    %202 = vst.msk [vmem:[#allocation2] sm:$0xff] %vm201, %v200
    // Predicated region
    $region22: #{_decoder_forward_impl.1} parent=1 // pred_check
      _
    $region23: #{_decoder_forward_impl.1} parent=1 // pred_check_branch
      %204 = sbr.rel (0) target = $region25
    $region24: #{_decoder_forward_impl.1} parent=1 // pred_region
      %s206 = ssub.s32 128, 128
      %207 = vsyncadd [#allocation3], %s206
      %s209 = sshll.u32 [#allocation2], 4
      %s210 = int_to_ptr.vmem [resolvable:$true] %s209
      %212 = dma.vmem_to_hbm [thread:$0]  %s210, 128, %s5, [#allocation3]
    $region25: #{_decoder_forward_impl.1} parent=1 // pred_fallthru
      _
    // Predicated region
    $region26: #{_decoder_forward_impl.1} parent=1 // pred_check
      _
    $region27: #{_decoder_forward_impl.1} parent=1 // pred_check_branch
      %214 = sbr.rel (0) target = $region29
    $region28: #{_decoder_forward_impl.1} parent=1 // pred_region
      %215 = dma.done [#allocation3], 128
    $region29: #{_decoder_forward_impl.1} parent=1 // pred_fallthru
      _
    %216 = vsyncpa [#allocation3], 1

// kernel: _decoder_forward_impl.1
$region0: #{_decoder_forward_impl.1}
  #allocation0 [shape = 'u32[]', space=smem, size = 0x4, offset = 0x4, fixed_abs, tag = 'smem constant byte address 0x4 - core index']
  #allocation1 [shape = 'u32[144,128]{1,0:T(1,128)}', space=vmem, size = 0x12000, scoped, tag = 'internal scratch']
  %s0 = inlined_call_operand.vmem [shape: f32[8,16], index: 0, kind: input, shape index: {}]
  %s1 = inlined_call_operand.vmem [shape: bf16[16,128], index: 1, kind: input, shape index: {}]
  %s2 = inlined_call_operand.vmem [shape: f32[1,128], index: 2, kind: input, shape index: {}]
  %s3 = inlined_call_operand.vmem [shape: bf16[128,64], index: 3, kind: input, shape index: {}]
  %s4 = inlined_call_operand.vmem [shape: f32[1,64], index: 4, kind: input, shape index: {}]
  %s5 = inlined_call_operand.hbm [shape: f32[8,64], index: 5, kind: output, shape index: {}]
  %s6 = sld [smem:[#allocation0]]
  $region30: #{_decoder_forward_impl.1} parent=0
    _
  %s8 = ssub.s32 1, %s6
  %s9 = scalar_select 0, %s8, %s6
  $region1: #{_decoder_forward_impl.1} parent=0
    #allocation2 [shape = 'u8[4096]{0}', space=vmem, size = 0x1000, scoped, tag = 'output window, operand 0, single buffered']
    #allocation3 [shape = 's32[1]{0}', space=sflag, size = 0x4, scoped, tag = 'scoped memory for _decoder_forward_impl.1']
    %10 = vsyncpa [#allocation3], 0
    // Predicated region
    $region2: #{_decoder_forward_impl.1} parent=1 // pred_check
      _
    $region3: #{_decoder_forward_impl.1} parent=1 // pred_check_branch
      %12 = sbr.rel (0) target = $region5
    $region4: #{_decoder_forward_impl.1} parent=1 // pred_region
      _
    $region5: #{_decoder_forward_impl.1} parent=1 // pred_fallthru
      _
    // Predicated region
    $region6: #{_decoder_forward_impl.1} parent=1 // pred_check
      _
    $region7: #{_decoder_forward_impl.1} parent=1 // pred_check_branch
      %14 = sbr.rel (0) target = $region9
    $region8: #{_decoder_forward_impl.1} parent=1 // pred_region
      _
    $region9: #{_decoder_forward_impl.1} parent=1 // pred_fallthru
      _
    // Predicated region
    $region10: #{_decoder_forward_impl.1} parent=1 // pred_check
      _
    $region11: #{_decoder_forward_impl.1} parent=1 // pred_check_branch
      %16 = sbr.rel (0) target = $region13
    $region12: #{_decoder_forward_impl.1} parent=1 // pred_region
      _
    $region13: #{_decoder_forward_impl.1} parent=1 // pred_fallthru
      _
    // Predicated region
    $region14: #{_decoder_forward_impl.1} parent=1 // pred_check
      _
    $region15: #{_decoder_forward_impl.1} parent=1 // pred_check_branch
      %18 = sbr.rel (0) target = $region17
    $region16: #{_decoder_forward_impl.1} parent=1 // pred_region
      _
    $region17: #{_decoder_forward_impl.1} parent=1 // pred_fallthru
      _
    // Predicated region
    $region18: #{_decoder_forward_impl.1} parent=1 // pred_check
      _
    $region19: #{_decoder_forward_impl.1} parent=1 // pred_check_branch
      %20 = sbr.rel (0) target = $region21
    $region20: #{_decoder_forward_impl.1} parent=1 // pred_region
      _
    $region21: #{_decoder_forward_impl.1} parent=1 // pred_fallthru
      _
    %v22 = vld [vmem:[%s0] sm:$0xff]
    %v23 = vpack.c.bf16 %v22, %v22
    %v24 = vld [vmem:[%s1] sm:$0xf]
    %v25 = vld [vmem:[%s1 + $0x4] sm:$0xf]
    %v26 = vld [vmem:[%s2] sm:$0x1]
    %v28 = vlaneseq
    %v29 = vshrl.u32 %v28, 7
    %v30 = vsub.s32 0, %v29
    %v31 = vrot.slane %v26, %v30
    %v35 = vunpack.c.l.b16 %v24
    %v36 = vunpack.c.l.b16 %v25
    %v37 = vpack.c.b16 %v36, %v35
    %vm39 = vcmask 130048
    %v41 = vsel %vm39, %v23, 0
    %43 = vmatprep.subr.bf16.mxu0 0
    %44 = vmatpush1.bf16.msra.mxu0 %v37
    %45 = vmatprep.subr.bf16.mxu0 0
    %46 = vmatpush1.bf16.msra.mxu0 0
    %47 = vmatprep.subr.bf16.mxu0 0
    %48 = vmatpush1.bf16.msra.mxu0 0
    %49 = vmatprep.subr.bf16.mxu0 0
    %50 = vmatpush1.bf16.msra.mxu0 0
    %51 = vmatprep.subr.bf16.mxu0 0
    %52 = vmatpush1.bf16.msra.mxu0 0
    %53 = vmatprep.subr.bf16.mxu0 0
    %54 = vmatpush1.bf16.msra.mxu0 0
    %55 = vmatprep.subr.bf16.mxu0 0
    %56 = vmatpush1.bf16.msra.mxu0 0
    %57 = vmatprep.subr.bf16.mxu0 0
    %58 = vmatpush1.bf16.msra.mxu0 0
    %59 = vmatprep.subr.bf16.mxu0 0
    %60 = vmatpush1.bf16.msra.mxu0 0
    %61 = vmatprep.subr.bf16.mxu0 0
    %62 = vmatpush1.bf16.msra.mxu0 0
    %63 = vmatprep.subr.bf16.mxu0 0
    %64 = vmatpush1.bf16.msra.mxu0 0
    %65 = vmatprep.subr.bf16.mxu0 0
    %66 = vmatpush1.bf16.msra.mxu0 0
    %67 = vmatprep.subr.bf16.mxu0 0
    %68 = vmatpush1.bf16.msra.mxu0 0
    %69 = vmatprep.subr.bf16.mxu0 0
    %70 = vmatpush1.bf16.msra.mxu0 0
    %71 = vmatprep.subr.bf16.mxu0 0
    %72 = vmatpush1.bf16.msra.mxu0 0
    %73 = vmatprep.subr.bf16.mxu0 0
    %74 = vmatpush1.bf16.msra.mxu0 0
    %75 = vmatprep.mubr.bf16.mxu0 0
    %76 = vmatmul.mubr.bf16.gmra.mrb[0].mxu0 %v41
    %v77 = vpop.f32.mrb[0].mxu0
    %v78 = vadd.f32 %v31, %v77
    %v79 = vpop.f32.mrb[0].mxu0
    %v80 = vpop.f32.mrb[0].mxu0
    %v81 = vpop.f32.mrb[0].mxu0
    %82 = vdwg.mxu0
    %v83 = vmul.f32 %v78, 0.2
    %v84 = vmax.f32 %v78, %v83
    %v85 = vpack.c.bf16 %v84, %v84
    %v86 = vld [vmem:[%s3] sm:$0xf]
    %v87 = vld [vmem:[%s3 + $0x4] sm:$0xf]
    %v88 = vld [vmem:[%s3 + $0x8] sm:$0xf]
    %v89 = vld [vmem:[%s3 + $0xc] sm:$0xf]
    %v90 = vld [vmem:[%s3 + $0x10] sm:$0xf]
    %v91 = vld [vmem:[%s3 + $0x14] sm:$0xf]
    %v92 = vld [vmem:[%s3 + $0x18] sm:$0xf]
    %v93 = vld [vmem:[%s3 + $0x1c] sm:$0xf]
    %v94 = vld [vmem:[%s3 + $0x20] sm:$0xf]
    %v95 = vld [vmem:[%s3 + $0x24] sm:$0xf]
    %v96 = vld [vmem:[%s3 + $0x28] sm:$0xf]
    %v97 = vld [vmem:[%s3 + $0x2c] sm:$0xf]
    %v98 = vld [vmem:[%s3 + $0x30] sm:$0xf]
    %v99 = vld [vmem:[%s3 + $0x34] sm:$0xf]
    %v100 = vld [vmem:[%s3 + $0x38] sm:$0xf]
    %v101 = vld [vmem:[%s3 + $0x3c] sm:$0xf]
    %v102 = vld [vmem:[%s4] sm:$0x1]
    %v104 = vlaneseq
    %v105 = vshrl.u32 %v104, 7
    %v106 = vsub.s32 0, %v105
    %v107 = vrot.slane %v102, %v106
    %v125 = vunpack.c.l.b16 %v86
    %v126 = vunpack.c.l.b16 %v87
    %v127 = vunpack.c.l.b16 %v88
    %v128 = vunpack.c.l.b16 %v89
    %v129 = vunpack.c.l.b16 %v90
    %v130 = vunpack.c.l.b16 %v91
    %v131 = vunpack.c.l.b16 %v92
    %v132 = vunpack.c.l.b16 %v93
    %v133 = vunpack.c.l.b16 %v94
    %v134 = vunpack.c.l.b16 %v95
    %v135 = vunpack.c.l.b16 %v96
    %v136 = vunpack.c.l.b16 %v97
    %v137 = vunpack.c.l.b16 %v98
    %v138 = vunpack.c.l.b16 %v99
    %v139 = vunpack.c.l.b16 %v100
    %v140 = vunpack.c.l.b16 %v101
    %v141 = vpack.c.b16 %v126, %v125
    %v142 = vpack.c.b16 %v128, %v127
    %v143 = vpack.c.b16 %v130, %v129
    %v144 = vpack.c.b16 %v132, %v131
    %v145 = vpack.c.b16 %v134, %v133
    %v146 = vpack.c.b16 %v136, %v135
    %v147 = vpack.c.b16 %v138, %v137
    %v148 = vpack.c.b16 %v140, %v139
    %157 = vmatprep.subr.bf16.mxu0 0
    %158 = vmatpush1.bf16.msra.mxu0 %v141
    %159 = vmatprep.subr.bf16.mxu0 0
    %160 = vmatpush1.bf16.msra.mxu0 %v142
    %161 = vmatprep.subr.bf16.mxu0 0
    %162 = vmatpush1.bf16.msra.mxu0 %v143
    %163 = vmatprep.subr.bf16.mxu0 0
    %164 = vmatpush1.bf16.msra.mxu0 %v144
    %165 = vmatprep.subr.bf16.mxu0 0
    %166 = vmatpush1.bf16.msra.mxu0 %v145
    %167 = vmatprep.subr.bf16.mxu0 0
    %168 = vmatpush1.bf16.msra.mxu0 %v146
    %169 = vmatprep.subr.bf16.mxu0 0
    %170 = vmatpush1.bf16.msra.mxu0 %v147
    %171 = vmatprep.subr.bf16.mxu0 0
    %172 = vmatpush1.bf16.msra.mxu0 %v148
    %173 = vmatprep.subr.bf16.mxu0 0
    %174 = vmatpush1.bf16.msra.mxu0 0
    %175 = vmatprep.subr.bf16.mxu0 0
    %176 = vmatpush1.bf16.msra.mxu0 0
    %177 = vmatprep.subr.bf16.mxu0 0
    %178 = vmatpush1.bf16.msra.mxu0 0
    %179 = vmatprep.subr.bf16.mxu0 0
    %180 = vmatpush1.bf16.msra.mxu0 0
    %181 = vmatprep.subr.bf16.mxu0 0
    %182 = vmatpush1.bf16.msra.mxu0 0
    %183 = vmatprep.subr.bf16.mxu0 0
    %184 = vmatpush1.bf16.msra.mxu0 0
    %185 = vmatprep.subr.bf16.mxu0 0
    %186 = vmatpush1.bf16.msra.mxu0 0
    %187 = vmatprep.subr.bf16.mxu0 0
    %188 = vmatpush1.bf16.msra.mxu0 0
    %189 = vmatprep.mubr.bf16.mxu0 0
    %190 = vmatmul.mubr.bf16.gmra.mrb[0].mxu0 %v85
    %v191 = vpop.f32.mrb[0].mxu0
    %v192 = vadd.f32 %v107, %v191
    %v193 = vpop.f32.mrb[0].mxu0
    %v194 = vpop.f32.mrb[0].mxu0
    %v195 = vpop.f32.mrb[0].mxu0
    %196 = vdwg.mxu0
    %v197 = vmul.f32 %v192, 0.5
    %v198 = vtanh.pop %v197
    %v199 = vadd.f32 %v198, 1.0
    %v200 = vmul.f32 %v199, 0.5
    %vm201 = vcmask 523264
    %202 = vst.msk [vmem:[#allocation2] sm:$0xff] %vm201, %v200
    // Predicated region
    $region22: #{_decoder_forward_impl.1} parent=1 // pred_check
      _
    $region23: #{_decoder_forward_impl.1} parent=1 // pred_check_branch
      %204 = sbr.rel (0) target = $region25
    $region24: #{_decoder_forward_impl.1} parent=1 // pred_region
      %s206 = ssub.s32 128, 128
      %207 = vsyncadd [#allocation3], %s206
      %s209 = sshll.u32 [#allocation2], 4
      %s210 = int_to_ptr.vmem [resolvable:$true] %s209
      %212 = dma.vmem_to_hbm [thread:$0]  %s210, 128, %s5, [#allocation3]
    $region25: #{_decoder_forward_impl.1} parent=1 // pred_fallthru
      _
    // Predicated region
    $region26: #{_decoder_forward_impl.1} parent=1 // pred_check
      _
    $region27: #{_decoder_forward_impl.1} parent=1 // pred_check_branch
      %214 = sbr.rel (0) target = $region29
    $region28: #{_decoder_forward_impl.1} parent=1 // pred_region
      %215 = dma.done [#allocation3], 128
    $region29: #{_decoder_forward_impl.1} parent=1 // pred_fallthru
      _
    %216 = vsyncpa [#allocation3], 1

</llo_original>
